<compile_context>
chip_gen: v5e
topology: v5e:2x2
jax: 0.10.0
libtpu: 0.0.40
codegen_flags: <defaults>
</compile_context>

<pallas_src>
import jax
import jax.numpy as jnp
from jax.experimental import pallas as pl
from jax.experimental.pallas import tpu as pltpu

# ---- module hyper-parameters (from the PyTorch source) ----------------------
ACTION_DIMS = [1, 1]
STATE_DIMS = [6, 4]
CRITIC_INPUT_DIM = sum(STATE_DIMS) + sum(ACTION_DIMS)   # = 12
HIDDEN_DIM = 32

# ---- packed-parameter slab layout (single (P_ROWS, 32) array) ----------------
IN_PAD = 16          # critic input dim padded to a bf16-sublane-friendly 16
R_W1 = 0             # rows  0:32, cols 0:IN_PAD -> w1^T (32, 16); cols 12:16 zero
C_B1 = 16            # rows  0:32, col 16        -> fc1 bias column (32,)
C_B2 = 17            # rows  0:32, col 17        -> fc2 bias column (32,)
C_B3 = 18            # row   0,    col 18        -> fc_out bias scalar
R_W2 = 32            # rows 32:64, cols 0:32     -> w2^T (32, 32)
R_W3 = 64            # row  64,    cols 0:32     -> fc_out weight row (1, 32)
P_ROWS = 72          # multiple of 8


def _round_up(n, m):
    return (n + m - 1) // m * m


def qvalue_kernel(x_ref, p_ref, out_ref):
    """fc1+relu -> fc2+relu -> fc_out on one lane-dense batch tile.

    x_ref:   (IN_PAD, TB)  input tile, batch on lanes (rows 12..15 are zero pad)
    p_ref:   (P_ROWS, 32)  packed, pre-normalized weights + biases (VMEM-resident)
    out_ref: (1, TB)       lane-dense row of q-values for this tile (f32)
    """
    cdt = p_ref.dtype

    x = x_ref[...]                                          # (IN_PAD, TB)
    w1t = p_ref[R_W1:R_W1 + HIDDEN_DIM, 0:IN_PAD]           # (32, 16)
    w2t = p_ref[R_W2:R_W2 + HIDDEN_DIM, :]                  # (32, 32)
    w3 = p_ref[R_W3:R_W3 + 1, :]                            # (1, 32)
    b1 = p_ref[R_W1:R_W1 + HIDDEN_DIM, C_B1:C_B1 + 1].astype(jnp.float32)  # (32, 1)
    b2 = p_ref[R_W1:R_W1 + HIDDEN_DIM, C_B2:C_B2 + 1].astype(jnp.float32)  # (32, 1)
    b3 = p_ref[0:1, C_B3:C_B3 + 1].astype(jnp.float32)                     # (1, 1)

    # All matmuls accumulate in f32; bias add / ReLU stay in f32 on the VPU.
    h1 = jnp.dot(w1t, x, preferred_element_type=jnp.float32) + b1          # (32, TB)
    h1 = jnp.maximum(h1, 0.0)

    h2 = jnp.dot(w2t, h1.astype(cdt), preferred_element_type=jnp.float32) + b2
    h2 = jnp.maximum(h2, 0.0)                                              # (32, TB)

    q = jnp.dot(w3, h2.astype(cdt), preferred_element_type=jnp.float32) + b3
    out_ref[...] = q                                                       # (1, TB)


def pack_qvalue_params(params, compute_dtype=jnp.bfloat16):
    """Apply weight_norm once (outside the kernel) and pack into ONE slab.

    params = (v1, g1, b1, v2, g2, b2, v3, g3, b3) in the weight_norm
    parameterization: v is (in, out), g and b are (1, out).
    Returns a (P_ROWS, 32) slab in `compute_dtype`.
    """
    v1, g1, b1, v2, g2, b2, v3, g3, b3 = params

    def wn(v, g):
        # w = g * v / ||v|| (norm over the input axis, per output unit), with a
        # tiny clamp so a pathological all-zero column cannot produce inf/nan.
        inv = jax.lax.rsqrt(jnp.maximum(jnp.sum(v * v, axis=0, keepdims=True), 1e-24))
        return v * (g * inv)

    w1 = wn(v1, g1)          # (12, 32)
    w2 = wn(v2, g2)          # (32, 32)
    w3 = wn(v3, g3)          # (32, 1)

    slab = jnp.zeros((P_ROWS, HIDDEN_DIM), jnp.float32)
    slab = slab.at[R_W1:R_W1 + HIDDEN_DIM, 0:CRITIC_INPUT_DIM].set(w1.T)   # w1^T
    slab = slab.at[R_W1:R_W1 + HIDDEN_DIM, C_B1].set(b1[0])                # fc1 bias
    slab = slab.at[R_W1:R_W1 + HIDDEN_DIM, C_B2].set(b2[0])                # fc2 bias
    slab = slab.at[0, C_B3].set(b3[0, 0])                                  # fc_out bias
    slab = slab.at[R_W2:R_W2 + HIDDEN_DIM, :].set(w2.T)                    # w2^T
    slab = slab.at[R_W3, :].set(w3[:, 0])                                  # fc_out weight
    return slab.astype(compute_dtype)


def _choose_tile(B, block_b):
    """Lane-aligned batch tile; guarantees >=2 grid steps when the batch allows
    (so v7x's two TensorCores both get work via dimension_semantics)."""
    b128 = _round_up(B, 128)
    tb = min(_round_up(block_b, 128), b128)
    if b128 >= 256 and b128 // tb < 2:
        tb = _round_up(pl.cdiv(b128, 2), 128)
    return tb


def qvalue_net_packed(x, p_slab, *, block_b=8192):
    """Run the kernel on a pre-packed parameter slab.  x: (B, 12) -> (B, 1)."""
    B = x.shape[0]
    cdt = p_slab.dtype
    TB = _choose_tile(B, block_b)
    Bp = _round_up(B, TB)
    nblk = Bp // TB

    # Single fused wrapper-side pass: transpose (batch -> lanes), pad 12->16 /
    # B->Bp, and cast to the compute dtype.  Padded rows/cols are zero.
    xp = jnp.zeros((IN_PAD, Bp), cdt).at[:CRITIC_INPUT_DIM, :B].set(x.T.astype(cdt))

    flops = 2 * Bp * (IN_PAD * HIDDEN_DIM + HIDDEN_DIM * HIDDEN_DIM + HIDDEN_DIM)
    bytes_accessed = (xp.size * xp.dtype.itemsize
                      + p_slab.size * p_slab.dtype.itemsize
                      + Bp * 4)

    out = pl.pallas_call(
        qvalue_kernel,
        out_shape=jax.ShapeDtypeStruct((1, Bp), jnp.float32),
        grid=(nblk,),
        in_specs=[
            pl.BlockSpec((IN_PAD, TB), lambda i: (0, i)),           # x tile (lane-dense)
            pl.BlockSpec((P_ROWS, HIDDEN_DIM), lambda i: (0, 0)),   # params (VMEM-resident)
        ],
        out_specs=pl.BlockSpec((1, TB), lambda i: (0, i)),          # lane-dense q row
        compiler_params=pltpu.CompilerParams(
            dimension_semantics=("parallel",),     # megacore batch split on v7x
            vmem_limit_bytes=48 * 1024 * 1024),    # headroom for large tiles, < v7x physical
        cost_estimate=pl.CostEstimate(
            flops=int(flops), transcendentals=0, bytes_accessed=int(bytes_accessed)),
    )(xp, p_slab)

    # (1, Bp) row -> (B, 1); padded tail columns hold garbage and are sliced off.
    return out.reshape(Bp, 1)[:B]


def qvalue_net(x, params, *, block_b=8192, compute_dtype=jnp.bfloat16):
    """QValueNet.forward: x (B, 12) -> q (B, 1).

    Convenience wrapper (packs params every call).  For repeated calls with the
    same parameters (DDPG rollout/eval), pack once with pack_qvalue_params and
    call qvalue_net_packed directly.
    `compute_dtype=jnp.float32` gives a bit-faithful-vs-reference path.
    """
    p_slab = pack_qvalue_params(params, compute_dtype)
    return qvalue_net_packed(x, p_slab, block_b=block_b)


def init_linear_params(key, in_dim, out_dim):
    """Deterministic init mirroring torch.nn.Linear + weight_norm.

    PyTorch Linear: W ~ U(-k, k), b ~ U(-k, k) with k = 1/sqrt(in_dim).
    weight_norm sets v = W, g = ||W|| (per output row).  Stored: v as (in, out),
    g and b as (1, out).
    """
    kw, kb = jax.random.split(key)
    bound = 1.0 / jnp.sqrt(jnp.float32(in_dim))
    w = jax.random.uniform(kw, (out_dim, in_dim), jnp.float32, -bound, bound)
    b = jax.random.uniform(kb, (out_dim,), jnp.float32, -bound, bound)
    g = jnp.sqrt(jnp.sum(w * w, axis=1))                 # (out,)
    v_t = jnp.transpose(w)                               # (in, out)
    return v_t, g.reshape(1, out_dim), b.reshape(1, out_dim)


def qvalue_net_ref(x, params):
    """Pure-JAX reference (exact PyTorch weight_norm semantics)."""
    v1, g1, b1, v2, g2, b2, v3, g3, b3 = params

    def wn(v, g):
        return v * (g / jnp.sqrt(jnp.sum(v * v, axis=0, keepdims=True)))

    h = jnp.maximum(x @ wn(v1, g1) + b1, 0.0)
    h = jnp.maximum(h @ wn(v2, g2) + b2, 0.0)
    return h @ wn(v3, g3) + b3


if __name__ == "__main__":
    key = jax.random.PRNGKey(0)
    k_x, k_x2, k1, k2, k3 = jax.random.split(key, 5)

    p1 = init_linear_params(k1, CRITIC_INPUT_DIM, HIDDEN_DIM)   # fc1
    p2 = init_linear_params(k2, HIDDEN_DIM, HIDDEN_DIM)         # fc2
    p3 = init_linear_params(k3, HIDDEN_DIM, 1)                  # fc_out
    params = (*p1, *p2, *p3)

    # 1) Small batch, f32 compute path (exact vs. reference), single grid step.
    x = jax.random.normal(k_x, (8, CRITIC_INPUT_DIM), jnp.float32)
    out = jax.block_until_ready(qvalue_net(x, params, compute_dtype=jnp.float32))
    ref = qvalue_net_ref(x, params)
    assert out.shape == (8, 1)
    assert jnp.allclose(out, ref, atol=1e-4, rtol=1e-4), (out, ref)

    # 2) Larger batch, default bf16 compute path, pre-packed params reused
    #    across two calls; exercises the batch grid / padding / >=2-step split.
    x2 = jax.random.normal(k_x2, (200, CRITIC_INPUT_DIM), jnp.float32)
    p_slab = pack_qvalue_params(params)                      # pack once, reuse
    out2 = jax.block_until_ready(qvalue_net_packed(x2, p_slab))            # TB=128, 2 steps
    out2b = jax.block_until_ready(qvalue_net_packed(x2, p_slab, block_b=128))
    ref2 = qvalue_net_ref(x2, params)
    assert out2.shape == (200, 1)
    assert jnp.allclose(out2, ref2, atol=3e-2, rtol=3e-2), (out2, ref2)
    assert jnp.allclose(out2b, ref2, atol=3e-2, rtol=3e-2), (out2b, ref2)

    print("KERNEL_OK")
</pallas_src>

<mosaic_0001>
module attributes {stable_mosaic.version = 11 : i64} {
  func.func @qvalue_kernel(%arg0: i32, %arg1: memref<16x128xf32, #tpu.memory_space<vmem>>, %arg2: memref<72x32xf32, #tpu.memory_space<vmem>>, %arg3: memref<1x128xf32, #tpu.memory_space<vmem>>) attributes {dimension_semantics = [#tpu.dimension_semantics<parallel>], iteration_bounds = array<i64: 1>, scalar_prefetch = 0 : i64, scratch_operands = 0 : i64, tpu.core_type = #tpu.core_type<tc>, window_params = [{transform_indices = @transform_0, window_bounds = array<i64: 16, 128>}, {pipeline_mode = #tpu.pipeline_mode<synchronous>, transform_indices = @transform_1, window_bounds = array<i64: 72, 32>}, {transform_indices = @transform_2, window_bounds = array<i64: 1, 128>}]} {
    %c0 = arith.constant 0 : index
    %c0_0 = arith.constant 0 : index
    %0 = vector.load %arg1[%c0, %c0_0] : memref<16x128xf32, #tpu.memory_space<vmem>>, vector<16x128xf32>
    %c0_1 = arith.constant 0 : index
    %c0_2 = arith.constant 0 : index
    %1 = vector.load %arg2[%c0_1, %c0_2] : memref<72x32xf32, #tpu.memory_space<vmem>>, vector<32x16xf32>
    %c32 = arith.constant 32 : index
    %c0_3 = arith.constant 0 : index
    %2 = vector.load %arg2[%c32, %c0_3] : memref<72x32xf32, #tpu.memory_space<vmem>>, vector<32x32xf32>
    %c64 = arith.constant 64 : index
    %c0_4 = arith.constant 0 : index
    %3 = vector.load %arg2[%c64, %c0_4] : memref<72x32xf32, #tpu.memory_space<vmem>>, vector<1x32xf32>
    %c0_5 = arith.constant 0 : index
    %c16 = arith.constant 16 : index
    %4 = vector.load %arg2[%c0_5, %c16] : memref<72x32xf32, #tpu.memory_space<vmem>>, vector<32x1xf32>
    %c0_6 = arith.constant 0 : index
    %c17 = arith.constant 17 : index
    %5 = vector.load %arg2[%c0_6, %c17] : memref<72x32xf32, #tpu.memory_space<vmem>>, vector<32x1xf32>
    %c0_7 = arith.constant 0 : index
    %c18 = arith.constant 18 : index
    %6 = vector.load %arg2[%c0_7, %c18] : memref<72x32xf32, #tpu.memory_space<vmem>>, vector<1x1xf32>
    %cst = arith.constant dense<0.000000e+00> : vector<32x128xf32>
    %7 = tpu.matmul %1, %0, %cst {dimension_numbers = #tpu.dot_dimension_numbers<[1], [0], [0], [1], [0, 0, 1, 1], [], []>} : vector<32x16xf32>, vector<16x128xf32>, vector<32x128xf32> -> vector<32x128xf32>
    %8 = vector.broadcast %4 : vector<32x1xf32> to vector<32x128xf32>
    %9 = arith.addf %7, %8 : vector<32x128xf32>
    %cst_8 = arith.constant 0.000000e+00 : f32
    %10 = vector.broadcast %cst_8 : f32 to vector<32x128xf32>
    %11 = arith.maximumf %9, %10 : vector<32x128xf32>
    %cst_9 = arith.constant dense<0.000000e+00> : vector<32x128xf32>
    %12 = tpu.matmul %2, %11, %cst_9 {dimension_numbers = #tpu.dot_dimension_numbers<[1], [0], [0], [1], [0, 0, 1, 1], [], []>} : vector<32x32xf32>, vector<32x128xf32>, vector<32x128xf32> -> vector<32x128xf32>
    %13 = vector.broadcast %5 : vector<32x1xf32> to vector<32x128xf32>
    %14 = arith.addf %12, %13 : vector<32x128xf32>
    %cst_10 = arith.constant 0.000000e+00 : f32
    %15 = vector.broadcast %cst_10 : f32 to vector<32x128xf32>
    %16 = arith.maximumf %14, %15 : vector<32x128xf32>
    %cst_11 = arith.constant dense<0.000000e+00> : vector<1x128xf32>
    %17 = tpu.matmul %3, %16, %cst_11 {dimension_numbers = #tpu.dot_dimension_numbers<[1], [0], [0], [1], [0, 0, 1, 1], [], []>} : vector<1x32xf32>, vector<32x128xf32>, vector<1x128xf32> -> vector<1x128xf32>
    %18 = vector.broadcast %6 : vector<1x1xf32> to vector<1x128xf32>
    %19 = arith.addf %17, %18 : vector<1x128xf32>
    %c0_12 = arith.constant 0 : index
    %c0_13 = arith.constant 0 : index
    %20 = vector.load %arg3[%c0_12, %c0_13] : memref<1x128xf32, #tpu.memory_space<vmem>>, vector<1x128xf32>
    tpu.vector_store %arg3[%c0_12, %c0_13], %19 {strides = array<i32>} : memref<1x128xf32, #tpu.memory_space<vmem>>, vector<1x128xf32>,
    return
  }
  func.func @transform_0(%arg0: i32) -> (i32, i32) {
    %c0_i32 = arith.constant 0 : i32
    %c0_i32_0 = arith.constant 0 : i32
    return %c0_i32, %arg0 : i32, i32
  }
  func.func @transform_1(%arg0: i32) -> (i32, i32) {
    %c0_i32 = arith.constant 0 : i32
    %c0_i32_0 = arith.constant 0 : i32
    %c0_i32_1 = arith.constant 0 : i32
    return %c0_i32, %c0_i32_0 : i32, i32
  }
  func.func @transform_2(%arg0: i32) -> (i32, i32) {
    %c0_i32 = arith.constant 0 : i32
    %c0_i32_0 = arith.constant 0 : i32
    return %c0_i32, %arg0 : i32, i32
  }
}

</mosaic_0001>

<llo_original>
// kernel: tpu_custom_call.1
$region0: #{tpu_custom_call.1}
  #allocation0 [shape = 'u32[]', space=smem, size = 0x4, offset = 0x4, fixed_abs, tag = 'smem constant byte address 0x4 - core index']
  #allocation1 [shape = 'u32[72,128]{1,0:T(1,128)}', space=vmem, size = 0x9000, scoped, tag = 'internal scratch']
  %s0 = inlined_call_operand.vmem [shape: f32[16,128], index: 0, kind: input, shape index: {}]
  %s1 = inlined_call_operand.vmem [shape: f32[72,32], index: 1, kind: input, shape index: {}]
  %s2 = inlined_call_operand.hbm [shape: f32[1,128], index: 2, kind: output, shape index: {}]
  %s3 = sld [smem:[#allocation0]]
  $region18: #{tpu_custom_call.1} parent=0
    _
  %s5 = ssub.s32 1, %s3
  %s6 = scalar_select 0, %s5, %s3
  $region1: #{tpu_custom_call.1} parent=0
    #allocation2 [shape = 'u8[512]{0}', space=vmem, size = 0x400, scoped, tag = 'output window, operand 0, single buffered']
    #allocation3 [shape = 's32[1]{0}', space=sflag, size = 0x4, scoped, tag = 'scoped memory for tpu_custom_call.1']
    %7 = vsyncpa [#allocation3], 0
    // Predicated region
    $region2: #{tpu_custom_call.1} parent=1 // pred_check
      _
    $region3: #{tpu_custom_call.1} parent=1 // pred_check_branch
      %9 = sbr.rel (0) target = $region5
    $region4: #{tpu_custom_call.1} parent=1 // pred_region
      _
    $region5: #{tpu_custom_call.1} parent=1 // pred_fallthru
      _
    // Predicated region
    $region6: #{tpu_custom_call.1} parent=1 // pred_check
      _
    $region7: #{tpu_custom_call.1} parent=1 // pred_check_branch
      %11 = sbr.rel (0) target = $region9
    $region8: #{tpu_custom_call.1} parent=1 // pred_region
      _
    $region9: #{tpu_custom_call.1} parent=1 // pred_fallthru
      _
    %v12 = vld [vmem:[%s0] sm:$0xff]
    %v13 = vld [vmem:[%s0 + $0x8] sm:$0xff]
    %v14 = vld [vmem:[%s1] sm:$0xff]
    %v15 = vld [vmem:[%s1 + $0x8] sm:$0xff]
    %v16 = vld [vmem:[%s1 + $0x10] sm:$0xff]
    %v17 = vld [vmem:[%s1 + $0x18] sm:$0xff]
    %v18 = vld [vmem:[%s1 + $0x20] sm:$0xff]
    %v19 = vld [vmem:[%s1 + $0x28] sm:$0xff]
    %v20 = vld [vmem:[%s1 + $0x30] sm:$0xff]
    %v21 = vld [vmem:[%s1 + $0x38] sm:$0xff]
    %v22 = vld [vmem:[%s1 + $0x40] sm:$0x1]
    %v23 = vld [vmem:[%s1] sm:$0x1]
    %25 = vset.pattern.permute.xlu0 16
    %26 = vperm.xlu0 %25, %v14
    %v27 = vpop.permute.xlu0 %26
    %30 = vset.pattern.permute.xlu0 16
    %31 = vperm.xlu0 %30, %v15
    %v32 = vpop.permute.xlu0 %31
    %35 = vset.pattern.permute.xlu0 16
    %36 = vperm.xlu0 %35, %v16
    %v37 = vpop.permute.xlu0 %36
    %40 = vset.pattern.permute.xlu0 16
    %41 = vperm.xlu0 %40, %v17
    %v42 = vpop.permute.xlu0 %41
    %vm44 = vcmask 130048
    %v45 = vsel %vm44, %v14, 0
    %v47 = vsel %vm44, %v15, 0
    %v49 = vsel %vm44, %v16, 0
    %v51 = vsel %vm44, %v17, 0
    %53 = vmatpush.msra.mxu0 0.0
    %54 = vmatpush.msra.mxu0 0.0
    %55 = vmatpush.msra.mxu0 0.0
    %56 = vmatpush.msra.mxu0 0.0
    %57 = vmatpush.msra.mxu0 0.0
    %58 = vmatpush.msra.mxu0 0.0
    %59 = vmatpush.msra.mxu0 0.0
    %60 = vmatpush.msra.mxu0 0.0
    %61 = vmatpush.msra.mxu0 0.0
    %62 = vmatpush.msra.mxu0 0.0
    %63 = vmatpush.msra.mxu0 0.0
    %64 = vmatpush.msra.mxu0 0.0
    %65 = vmatpush.msra.mxu0 0.0
    %66 = vmatpush.msra.mxu0 0.0
    %67 = vmatpush.msra.mxu0 %v13
    %68 = vmatpush.msra.mxu0 %v12
    %69 = vmatmul.f32.gmra.mxu0 %v45
    %v70 = vpop.f32.mrf.mxu0
    %v71 = vadd.f32 %v27, %v70
    %72 = vmatmul.f32.gmra.mxu0 %v47
    %v73 = vpop.f32.mrf.mxu0
    %v74 = vadd.f32 %v32, %v73
    %75 = vmatmul.f32.gmra.mxu0 %v49
    %v76 = vpop.f32.mrf.mxu0
    %v77 = vadd.f32 %v37, %v76
    %78 = vmatmul.f32.gmra.mxu0 %v51
    %v79 = vpop.f32.mrf.mxu0
    %v80 = vadd.f32 %v42, %v79
    %81 = vdwg.mxu0
    %v82 = vmax.f32 %v71, 0.0
    %v83 = vmax.f32 %v74, 0.0
    %v84 = vmax.f32 %v77, 0.0
    %v85 = vmax.f32 %v80, 0.0
    %86 = vset.pattern.permute.xlu0 17
    %87 = vperm.xlu0 %86, %v14
    %v88 = vpop.permute.xlu0 %87
    %90 = vset.pattern.permute.xlu0 17
    %91 = vperm.xlu0 %90, %v15
    %v92 = vpop.permute.xlu0 %91
    %94 = vset.pattern.permute.xlu0 17
    %95 = vperm.xlu0 %94, %v16
    %v96 = vpop.permute.xlu0 %95
    %98 = vset.pattern.permute.xlu0 17
    %99 = vperm.xlu0 %98, %v17
    %v100 = vpop.permute.xlu0 %99
    %vm102 = vcmask 261120
    %v104 = vsel %vm102, %v18, 0
    %v107 = vsel %vm102, %v19, 0
    %v110 = vsel %vm102, %v20, 0
    %v113 = vsel %vm102, %v21, 0
    %115 = vmatpush.msra.mxu0 0.0
    %116 = vmatpush.msra.mxu0 0.0
    %117 = vmatpush.msra.mxu0 0.0
    %118 = vmatpush.msra.mxu0 0.0
    %119 = vmatpush.msra.mxu0 0.0
    %120 = vmatpush.msra.mxu0 0.0
    %121 = vmatpush.msra.mxu0 0.0
    %122 = vmatpush.msra.mxu0 0.0
    %123 = vmatpush.msra.mxu0 0.0
    %124 = vmatpush.msra.mxu0 0.0
    %125 = vmatpush.msra.mxu0 0.0
    %126 = vmatpush.msra.mxu0 0.0
    %127 = vmatpush.msra.mxu0 %v85
    %128 = vmatpush.msra.mxu0 %v84
    %129 = vmatpush.msra.mxu0 %v83
    %130 = vmatpush.msra.mxu0 %v82
    %131 = vmatmul.f32.gmra.mxu0 %v104
    %v132 = vpop.f32.mrf.mxu0
    %v133 = vadd.f32 %v88, %v132
    %134 = vmatmul.f32.gmra.mxu0 %v107
    %v135 = vpop.f32.mrf.mxu0
    %v136 = vadd.f32 %v92, %v135
    %137 = vmatmul.f32.gmra.mxu0 %v110
    %v138 = vpop.f32.mrf.mxu0
    %v139 = vadd.f32 %v96, %v138
    %140 = vmatmul.f32.gmra.mxu0 %v113
    %v141 = vpop.f32.mrf.mxu0
    %v142 = vadd.f32 %v100, %v141
    %143 = vdwg.mxu0
    %v144 = vmax.f32 %v133, 0.0
    %v145 = vmax.f32 %v136, 0.0
    %v146 = vmax.f32 %v139, 0.0
    %v147 = vmax.f32 %v142, 0.0
    %149 = vset.pattern.permute.xlu0 18
    %150 = vperm.xlu0 %149, %v23
    %v151 = vpop.permute.xlu0 %150
    %v154 = vsel %vm102, %v22, 0
    %156 = vmatpush.msra.mxu0 0.0
    %157 = vmatpush.msra.mxu0 0.0
    %158 = vmatpush.msra.mxu0 0.0
    %159 = vmatpush.msra.mxu0 0.0
    %160 = vmatpush.msra.mxu0 0.0
    %161 = vmatpush.msra.mxu0 0.0
    %162 = vmatpush.msra.mxu0 0.0
    %163 = vmatpush.msra.mxu0 0.0
    %164 = vmatpush.msra.mxu0 0.0
    %165 = vmatpush.msra.mxu0 0.0
    %166 = vmatpush.msra.mxu0 0.0
    %167 = vmatpush.msra.mxu0 0.0
    %168 = vmatpush.msra.mxu0 %v147
    %169 = vmatpush.msra.mxu0 %v146
    %170 = vmatpush.msra.mxu0 %v145
    %171 = vmatpush.msra.mxu0 %v144
    %172 = vmatmul.f32.gmra.mxu0 %v154
    %v173 = vpop.f32.mrf.mxu0
    %v174 = vadd.f32 %v151, %v173
    %175 = vdwg.mxu0
    %176 = vst [vmem:[#allocation2] sm:$0x1] %v174
    // Predicated region
    $region10: #{tpu_custom_call.1} parent=1 // pred_check
      _
    $region11: #{tpu_custom_call.1} parent=1 // pred_check_branch
      %178 = sbr.rel (0) target = $region13
    $region12: #{tpu_custom_call.1} parent=1 // pred_region
      %180 = vsyncadd [#allocation3], 0
      %s182 = sshll.u32 [#allocation2], 4
      %s183 = int_to_ptr.vmem [resolvable:$true] %s182
      %s184 = sshll.u32 %s2, 4
      %s185 = int_to_ptr.hbm [resolvable:$true] %s184
      %187 = dma.vmem_to_hbm [thread:$0]  %s183, 16, %s185, [#allocation3]
    $region13: #{tpu_custom_call.1} parent=1 // pred_fallthru
      _
    // Predicated region
    $region14: #{tpu_custom_call.1} parent=1 // pred_check
      _
    $region15: #{tpu_custom_call.1} parent=1 // pred_check_branch
      %189 = sbr.rel (0) target = $region17
    $region16: #{tpu_custom_call.1} parent=1 // pred_region
      %191 = dma.done [#allocation3], 16
    $region17: #{tpu_custom_call.1} parent=1 // pred_fallthru
      _
    %192 = vsyncpa [#allocation3], 1

</llo_original>
